<compile_context>
chip_gen: v6e
topology: v6e:2x2x1
jax: 0.10.0
libtpu: 0.0.40
codegen_flags: <defaults>
</compile_context>

<pallas_src>
import numpy as np

import jax
import jax.numpy as jnp
from jax.experimental import pallas as pl
from jax.experimental.pallas import tpu as pltpu


# -------------------------- fused encoder + KLD kernel -----------------------
def _encoder_kernel(x_ref, a_ref, c_ref,
                    wn1_ref, fe1_ref, b1_ref,
                    wn2_ref, fe2_ref, b2_ref,
                    wn3_ref, fe3_ref, b3_ref,
                    hid_ref, mu_ref, kld_ref):
    f32 = jnp.float32
    bf16 = jnp.bfloat16

    x = x_ref[...]          # [N, D] f32 node reps (kept f32 for the residual)
    a = a_ref[...]          # [N, N] bf16 combined in+out adjacency counts
    c = c_ref[...]          # [N, V] bf16 combined in+out edge-type counts

    def gcn_layer(x_in, ns, wn_ref, fe_ref, b_ref):
        # node term: (A @ x_in) @ W_node   (ns supplied, possibly shared)
        lin = jnp.dot(ns.astype(bf16), wn_ref[...], preferred_element_type=f32)
        # edge term: C @ (E @ W_edge)  -- E @ W_edge pre-folded host-side
        edge = jnp.dot(c, fe_ref[...], preferred_element_type=f32)
        # b_ref already holds 2*bias (same Linear applied to in and out sums)
        return x_in + lin + edge + b_ref[...]

    # gc1
    ns1 = jnp.dot(a, x.astype(bf16), preferred_element_type=f32)     # [N, D]
    hidden = gcn_layer(x, ns1, wn1_ref, fe1_ref, b1_ref)

    # gc2 / gc3 both consume gc1's output and share its neighbor sum
    nsh = jnp.dot(a, hidden.astype(bf16), preferred_element_type=f32)
    mu = gcn_layer(hidden, nsh, wn2_ref, fe2_ref, b2_ref)
    logvar = gcn_layer(hidden, nsh, wn3_ref, fe3_ref, b3_ref)

    hid_ref[...] = hidden
    mu_ref[...] = mu.astype(bf16)       # decoder operand -> bf16 output

    # KLD = -0.5/N * mean_n( sum_d(1 + 2*lv_t - mu_t^2 - exp(2*lv_t)) )
    n = mu.shape[0]
    mu_t = jnp.tanh(mu)
    lv_t = jnp.tanh(logvar)
    total = jnp.sum(1.0 + 2.0 * lv_t - mu_t * mu_t - jnp.exp(2.0 * lv_t))
    kld_ref[0, 0] = (-0.5 / n) * (total / n)


# --------------------------- tiled inner-product decoder ---------------------
def _decoder_kernel(zr_ref, zc_ref, adj_ref):
    adj_ref[...] = jax.lax.dot_general(
        zr_ref[...], zc_ref[...], (((1,), (1,)), ((), ())),
        preferred_element_type=jnp.float32)


def _pick_tile(n, target):
    """Largest multiple-of-128 tile <= target that divides n (n itself if small)."""
    if n <= target:
        return n
    t = (target // 128) * 128
    while t >= 128:
        if n % t == 0:
            return t
        t -= 128
    return n


def _vmem_limit(nbytes, headroom=8 << 20, floor=24 << 20, cap=60 << 20):
    # residents x4 covers pipeline double-buffering + f32 intermediates.
    return int(min(max(4 * nbytes + headroom, floor), cap))


# ------------------------------- VGAE forward --------------------------------
def vgae_forward(params, node_reps, in_indices, in_edges, in_mask,
                 out_indices, out_edges, out_mask, *, compute_adj=True):
    N, D = node_reps.shape
    V = params["gc1"]["edge_emb"].shape[0]
    bf16 = jnp.bfloat16

    # JAX glue: fold the data-dependent gathers + masks into dense bf16
    # operator matrices so the kernel does pure MXU work.
    #   A[i, j] = sum_k in_mask[i,k]*[in_idx[i,k]==j] + out_mask[i,k]*[out_idx[i,k]==j]
    #   C[i, v] = sum_k in_mask[i,k]*[in_edge[i,k]==v] + out_mask[i,k]*[out_edge[i,k]==v]
    # (counts <= 2K are exactly representable in bf16)
    def dense_op(idx, mask, width):
        return jnp.einsum("nk,nkj->nj", mask,
                          jax.nn.one_hot(idx, width, dtype=mask.dtype))

    A = (dense_op(in_indices, in_mask, N)
         + dense_op(out_indices, out_mask, N)).astype(bf16)
    C = (dense_op(in_edges, in_mask, V)
         + dense_op(out_edges, out_mask, V)).astype(bf16)

    # Pre-split / pre-fold weights (host side, tiny matrices):
    #   W [2D, D]: rows 0:D -> node half, rows D:2D -> edge half
    #   Fe = E @ W_edge  [V, D];   bias passed pre-doubled (in + out share W,b)
    def prep(layer):
        w = layer["w"]
        wn = w[:D, :].astype(bf16)
        fe = (layer["edge_emb"] @ w[D:, :]).astype(bf16)
        b2 = (2.0 * layer["b"]).astype(jnp.float32)
        return wn, fe, b2

    wn1, fe1, b1 = prep(params["gc1"])
    wn2, fe2, b2 = prep(params["gc2"])
    wn3, fe3, b3 = prep(params["gc3"])

    vmem = pl.BlockSpec(memory_space=pltpu.MemorySpace.VMEM)
    smem = pl.BlockSpec(memory_space=pltpu.MemorySpace.SMEM)

    enc_inputs = (node_reps, A, C, wn1, fe1, b1, wn2, fe2, b2, wn3, fe3, b3)
    enc_bytes = sum(int(a.size) * a.dtype.itemsize for a in enc_inputs)
    enc_bytes += N * D * 4 + N * D * 2 + 4          # hidden + mu_bf16 + kld

    hidden, mu_bf16, kld = pl.pallas_call(
        _encoder_kernel,
        out_shape=(jax.ShapeDtypeStruct((N, D), jnp.float32),   # hidden
                   jax.ShapeDtypeStruct((N, D), bf16),          # mu (Z operand)
                   jax.ShapeDtypeStruct((1, 1), jnp.float32)),  # KLD scalar
        in_specs=[vmem] * 12,
        out_specs=(vmem, vmem, smem),
        compiler_params=pltpu.CompilerParams(
            vmem_limit_bytes=_vmem_limit(enc_bytes)),
    )(*enc_inputs)

    adj = None
    if compute_adj:
        # eval-mode reparameterize -> Z = mu (un-activated); decoder act = id.
        tm = _pick_tile(N, 256)
        tn = _pick_tile(N, 512)
        dec_bytes = tm * D * 2 + tn * D * 2 + tm * tn * 4
        adj = pl.pallas_call(
            _decoder_kernel,
            out_shape=jax.ShapeDtypeStruct((N, N), jnp.float32),
            grid=(N // tm, N // tn),
            in_specs=[pl.BlockSpec((tm, D), lambda i, j: (i, 0)),
                      pl.BlockSpec((tn, D), lambda i, j: (j, 0))],
            out_specs=pl.BlockSpec((tm, tn), lambda i, j: (i, j)),
            compiler_params=pltpu.CompilerParams(
                dimension_semantics=("parallel", "parallel"),
                vmem_limit_bytes=_vmem_limit(dec_bytes)),
        )(mu_bf16, mu_bf16)

    # forward(pretrain=False) returns (hidden, KLDloss); adj (reconstruct_edge)
    # is unused on that path, hence the compute_adj flag.
    return hidden, kld[0, 0], adj


# ------------------------------ pure-JAX reference ----------------------------
def vgae_reference(params, x, ii, ie, im, oi, oe, om):
    def gcn(x_in, layer):
        E, W, b = layer["edge_emb"], layer["w"], layer["b"]

        def side(idx, edg, msk):
            reps = jnp.concatenate([x_in[idx], E[edg]], -1) * msk[..., None]
            return reps.sum(1) @ W + b

        return x_in + side(ii, ie, im) + side(oi, oe, om)

    hidden = gcn(x, params["gc1"])
    mu = gcn(hidden, params["gc2"])
    logvar = gcn(hidden, params["gc3"])
    mu_t, lv_t = jnp.tanh(mu), jnp.tanh(logvar)
    n = mu.shape[0]
    kld = -0.5 / n * jnp.mean(
        jnp.sum(1.0 + 2.0 * lv_t - mu_t ** 2 - jnp.exp(lv_t) ** 2, axis=1))
    adj = mu @ mu.T
    return hidden, kld, adj


# ---------------------------------- main --------------------------------------
if __name__ == "__main__":
    N, K, D, V = 16, 4, 32, 8   # nodes, neighbor slots, embed_dim, edge vocab

    key = jax.random.PRNGKey(0)
    ks = jax.random.split(key, 12)

    node_reps = jax.random.normal(ks[0], (N, D), jnp.float32)
    in_indices = jax.random.randint(ks[1], (N, K), 0, N)
    out_indices = jax.random.randint(ks[2], (N, K), 0, N)
    in_edges = jax.random.randint(ks[3], (N, K), 0, V)
    out_edges = jax.random.randint(ks[4], (N, K), 0, V)
    in_mask = (jax.random.uniform(ks[5], (N, K)) > 0.3).astype(jnp.float32)
    out_mask = (jax.random.uniform(ks[6], (N, K)) > 0.3).astype(jnp.float32)

    def init_layer(k):
        k1, k2, k3 = jax.random.split(k, 3)
        return dict(
            edge_emb=jax.random.normal(k1, (V, D), jnp.float32),
            # nn.Linear(2D -> D): weight.T stored as [2D, D]
            # (rows 0:D = node half, rows D:2D = edge half, matching
            #  torch.cat([node_reps, edge_reps], -1)).
            w=0.1 * jax.random.normal(k2, (2 * D, D), jnp.float32),
            b=0.05 * jax.random.normal(k3, (1, D), jnp.float32),
        )

    params = {
        "gc1": init_layer(ks[7]),
        "gc2": init_layer(ks[8]),
        "gc3": init_layer(ks[9]),
    }

    # Full-semantics path: decoder reconstruction computed (like the module).
    hidden, kld, adj = vgae_forward(params, node_reps, in_indices, in_edges,
                                    in_mask, out_indices, out_edges, out_mask,
                                    compute_adj=True)
    jax.block_until_ready((hidden, kld, adj))
    assert hidden.shape == (N, D)
    assert adj.shape == (N, N)
    assert kld.shape == ()

    # Numerical check vs. f32 pure-JAX reference (bf16 MXU -> loose tolerance).
    hid_r, kld_r, adj_r = jax.block_until_ready(
        vgae_reference(params, node_reps, in_indices, in_edges, in_mask,
                       out_indices, out_edges, out_mask))
    np.testing.assert_allclose(np.asarray(hidden), np.asarray(hid_r),
                               rtol=0.08, atol=0.08)
    np.testing.assert_allclose(float(kld), float(kld_r), rtol=0.08, atol=0.08)
    np.testing.assert_allclose(np.asarray(adj), np.asarray(adj_r),
                               rtol=0.08, atol=2.0)

    # Fast path: pretrain=False discards adj, so skip the O(N^2) decoder call.
    hidden2, kld2, adj2 = vgae_forward(params, node_reps, in_indices, in_edges,
                                       in_mask, out_indices, out_edges, out_mask,
                                       compute_adj=False)
    jax.block_until_ready((hidden2, kld2))
    assert hidden2.shape == (N, D)
    assert kld2.shape == ()
    assert adj2 is None

    print("KERNEL_OK")
</pallas_src>

<mosaic_0001>
module attributes {stable_mosaic.version = 11 : i64} {
  func.func @_encoder_kernel(%arg0: memref<16x32xf32, #tpu.memory_space<vmem>>, %arg1: memref<16x16xbf16, #tpu.memory_space<vmem>>, %arg2: memref<16x8xbf16, #tpu.memory_space<vmem>>, %arg3: memref<32x32xbf16, #tpu.memory_space<vmem>>, %arg4: memref<8x32xbf16, #tpu.memory_space<vmem>>, %arg5: memref<1x32xf32, #tpu.memory_space<vmem>>, %arg6: memref<32x32xbf16, #tpu.memory_space<vmem>>, %arg7: memref<8x32xbf16, #tpu.memory_space<vmem>>, %arg8: memref<1x32xf32, #tpu.memory_space<vmem>>, %arg9: memref<32x32xbf16, #tpu.memory_space<vmem>>, %arg10: memref<8x32xbf16, #tpu.memory_space<vmem>>, %arg11: memref<1x32xf32, #tpu.memory_space<vmem>>, %arg12: memref<16x32xf32, #tpu.memory_space<vmem>>, %arg13: memref<16x32xbf16, #tpu.memory_space<vmem>>, %arg14: memref<1x1xf32, #tpu.memory_space<smem>>) attributes {dimension_semantics = [], scalar_prefetch = 0 : i64, scratch_operands = 0 : i64, tpu.core_type = #tpu.core_type<tc>} {
    %c0 = arith.constant 0 : index
    %c0_0 = arith.constant 0 : index
    %0 = vector.load %arg0[%c0, %c0_0] : memref<16x32xf32, #tpu.memory_space<vmem>>, vector<16x32xf32>
    %c0_1 = arith.constant 0 : index
    %c0_2 = arith.constant 0 : index
    %1 = vector.load %arg1[%c0_1, %c0_2] : memref<16x16xbf16, #tpu.memory_space<vmem>>, vector<16x16xbf16>
    %c0_3 = arith.constant 0 : index
    %c0_4 = arith.constant 0 : index
    %2 = vector.load %arg2[%c0_3, %c0_4] : memref<16x8xbf16, #tpu.memory_space<vmem>>, vector<16x8xbf16>
    %3 = arith.truncf %0 : vector<16x32xf32> to vector<16x32xbf16>
    %cst = arith.constant dense<0.000000e+00> : vector<16x32xf32>
    %4 = tpu.matmul %1, %3, %cst {dimension_numbers = #tpu.dot_dimension_numbers<[1], [0], [0], [1], [0, 0, 1, 1], [], []>} : vector<16x16xbf16>, vector<16x32xbf16>, vector<16x32xf32> -> vector<16x32xf32>
    %5 = arith.truncf %4 : vector<16x32xf32> to vector<16x32xbf16>
    %c0_5 = arith.constant 0 : index
    %c0_6 = arith.constant 0 : index
    %6 = vector.load %arg3[%c0_5, %c0_6] : memref<32x32xbf16, #tpu.memory_space<vmem>>, vector<32x32xbf16>
    %cst_7 = arith.constant dense<0.000000e+00> : vector<16x32xf32>
    %7 = tpu.matmul %5, %6, %cst_7 {dimension_numbers = #tpu.dot_dimension_numbers<[1], [0], [0], [1], [0, 0, 1, 1], [], []>} : vector<16x32xbf16>, vector<32x32xbf16>, vector<16x32xf32> -> vector<16x32xf32>
    %c0_8 = arith.constant 0 : index
    %c0_9 = arith.constant 0 : index
    %8 = vector.load %arg4[%c0_8, %c0_9] : memref<8x32xbf16, #tpu.memory_space<vmem>>, vector<8x32xbf16>
    %cst_10 = arith.constant dense<0.000000e+00> : vector<16x32xf32>
    %9 = tpu.matmul %2, %8, %cst_10 {dimension_numbers = #tpu.dot_dimension_numbers<[1], [0], [0], [1], [0, 0, 1, 1], [], []>} : vector<16x8xbf16>, vector<8x32xbf16>, vector<16x32xf32> -> vector<16x32xf32>
    %10 = arith.addf %0, %7 : vector<16x32xf32>
    %11 = arith.addf %10, %9 : vector<16x32xf32>
    %c0_11 = arith.constant 0 : index
    %c0_12 = arith.constant 0 : index
    %12 = vector.load %arg5[%c0_11, %c0_12] : memref<1x32xf32, #tpu.memory_space<vmem>>, vector<1x32xf32>
    %13 = vector.broadcast %12 : vector<1x32xf32> to vector<16x32xf32>
    %14 = arith.addf %11, %13 : vector<16x32xf32>
    %15 = arith.truncf %14 : vector<16x32xf32> to vector<16x32xbf16>
    %cst_13 = arith.constant dense<0.000000e+00> : vector<16x32xf32>
    %16 = tpu.matmul %1, %15, %cst_13 {dimension_numbers = #tpu.dot_dimension_numbers<[1], [0], [0], [1], [0, 0, 1, 1], [], []>} : vector<16x16xbf16>, vector<16x32xbf16>, vector<16x32xf32> -> vector<16x32xf32>
    %17 = arith.truncf %16 : vector<16x32xf32> to vector<16x32xbf16>
    %c0_14 = arith.constant 0 : index
    %c0_15 = arith.constant 0 : index
    %18 = vector.load %arg6[%c0_14, %c0_15] : memref<32x32xbf16, #tpu.memory_space<vmem>>, vector<32x32xbf16>
    %cst_16 = arith.constant dense<0.000000e+00> : vector<16x32xf32>
    %19 = tpu.matmul %17, %18, %cst_16 {dimension_numbers = #tpu.dot_dimension_numbers<[1], [0], [0], [1], [0, 0, 1, 1], [], []>} : vector<16x32xbf16>, vector<32x32xbf16>, vector<16x32xf32> -> vector<16x32xf32>
    %c0_17 = arith.constant 0 : index
    %c0_18 = arith.constant 0 : index
    %20 = vector.load %arg7[%c0_17, %c0_18] : memref<8x32xbf16, #tpu.memory_space<vmem>>, vector<8x32xbf16>
    %cst_19 = arith.constant dense<0.000000e+00> : vector<16x32xf32>
    %21 = tpu.matmul %2, %20, %cst_19 {dimension_numbers = #tpu.dot_dimension_numbers<[1], [0], [0], [1], [0, 0, 1, 1], [], []>} : vector<16x8xbf16>, vector<8x32xbf16>, vector<16x32xf32> -> vector<16x32xf32>
    %22 = arith.addf %14, %19 : vector<16x32xf32>
    %23 = arith.addf %22, %21 : vector<16x32xf32>
    %c0_20 = arith.constant 0 : index
    %c0_21 = arith.constant 0 : index
    %24 = vector.load %arg8[%c0_20, %c0_21] : memref<1x32xf32, #tpu.memory_space<vmem>>, vector<1x32xf32>
    %25 = vector.broadcast %24 : vector<1x32xf32> to vector<16x32xf32>
    %26 = arith.addf %23, %25 : vector<16x32xf32>
    %27 = arith.truncf %16 : vector<16x32xf32> to vector<16x32xbf16>
    %c0_22 = arith.constant 0 : index
    %c0_23 = arith.constant 0 : index
    %28 = vector.load %arg9[%c0_22, %c0_23] : memref<32x32xbf16, #tpu.memory_space<vmem>>, vector<32x32xbf16>
    %cst_24 = arith.constant dense<0.000000e+00> : vector<16x32xf32>
    %29 = tpu.matmul %27, %28, %cst_24 {dimension_numbers = #tpu.dot_dimension_numbers<[1], [0], [0], [1], [0, 0, 1, 1], [], []>} : vector<16x32xbf16>, vector<32x32xbf16>, vector<16x32xf32> -> vector<16x32xf32>
    %c0_25 = arith.constant 0 : index
    %c0_26 = arith.constant 0 : index
    %30 = vector.load %arg10[%c0_25, %c0_26] : memref<8x32xbf16, #tpu.memory_space<vmem>>, vector<8x32xbf16>
    %cst_27 = arith.constant dense<0.000000e+00> : vector<16x32xf32>
    %31 = tpu.matmul %2, %30, %cst_27 {dimension_numbers = #tpu.dot_dimension_numbers<[1], [0], [0], [1], [0, 0, 1, 1], [], []>} : vector<16x8xbf16>, vector<8x32xbf16>, vector<16x32xf32> -> vector<16x32xf32>
    %32 = arith.addf %14, %29 : vector<16x32xf32>
    %33 = arith.addf %32, %31 : vector<16x32xf32>
    %c0_28 = arith.constant 0 : index
    %c0_29 = arith.constant 0 : index
    %34 = vector.load %arg11[%c0_28, %c0_29] : memref<1x32xf32, #tpu.memory_space<vmem>>, vector<1x32xf32>
    %35 = vector.broadcast %34 : vector<1x32xf32> to vector<16x32xf32>
    %36 = arith.addf %33, %35 : vector<16x32xf32>
    %c0_30 = arith.constant 0 : index
    %c0_31 = arith.constant 0 : index
    %37 = vector.load %arg12[%c0_30, %c0_31] : memref<16x32xf32, #tpu.memory_space<vmem>>, vector<16x32xf32>
    tpu.vector_store %arg12[%c0_30, %c0_31], %14 {strides = array<i32>} : memref<16x32xf32, #tpu.memory_space<vmem>>, vector<16x32xf32>,
    %38 = arith.truncf %26 : vector<16x32xf32> to vector<16x32xbf16>
    %c0_32 = arith.constant 0 : index
    %c0_33 = arith.constant 0 : index
    %39 = vector.load %arg13[%c0_32, %c0_33] : memref<16x32xbf16, #tpu.memory_space<vmem>>, vector<16x32xbf16>
    tpu.vector_store %arg13[%c0_32, %c0_33], %38 {strides = array<i32>} : memref<16x32xbf16, #tpu.memory_space<vmem>>, vector<16x32xbf16>,
    %40 = math.tanh %26 : vector<16x32xf32>
    %41 = math.tanh %36 : vector<16x32xf32>
    %cst_34 = arith.constant 2.000000e+00 : f32
    %42 = vector.broadcast %cst_34 : f32 to vector<16x32xf32>
    %43 = arith.mulf %42, %41 : vector<16x32xf32>
    %cst_35 = arith.constant 1.000000e+00 : f32
    %44 = vector.broadcast %cst_35 : f32 to vector<16x32xf32>
    %45 = arith.addf %44, %43 : vector<16x32xf32>
    %46 = arith.mulf %40, %40 : vector<16x32xf32>
    %47 = arith.subf %45, %46 : vector<16x32xf32>
    %cst_36 = arith.constant 2.000000e+00 : f32
    %48 = vector.broadcast %cst_36 : f32 to vector<16x32xf32>
    %49 = arith.mulf %48, %41 : vector<16x32xf32>
    %50 = math.exp %49 : vector<16x32xf32>
    %51 = arith.subf %47, %50 : vector<16x32xf32>
    %52 = vector.shape_cast %51 : vector<16x32xf32> to vector<1x16x32xf32>
    %cst_37 = arith.constant dense<0.000000e+00> : vector<1xf32>
    %53 = vector.multi_reduction <add>, %52, %cst_37 [1, 2] : vector<1x16x32xf32> to vector<1xf32>
    %54 = vector.shape_cast %53 : vector<1xf32> to vector<1x1x1xf32>
    %55 = vector.extract %54[0, 0, 0] : f32 from vector<1x1x1xf32>
    %cst_38 = arith.constant 1.600000e+01 : f32
    %56 = arith.divf %55, %cst_38 : f32
    %cst_39 = arith.constant -3.125000e-02 : f32
    %57 = arith.mulf %cst_39, %56 : f32
    %c0_40 = arith.constant 0 : index
    %c0_41 = arith.constant 0 : index
    %58 = memref.load %arg14[%c0_40, %c0_41] : memref<1x1xf32, #tpu.memory_space<smem>>
    memref.store %57, %arg14[%c0_40, %c0_41] : memref<1x1xf32, #tpu.memory_space<smem>>
    return
  }
}

</mosaic_0001>

<llo_original>
// kernel: tpu_custom_call.1
$region0: #{tpu_custom_call.1}
  #allocation0 [shape = 'u32[]', space=smem, size = 0x4, offset = 0x4, fixed_abs, tag = 'smem constant byte address 0x4 - core index']
  #allocation1 [shape = 'u32[144,128]{1,0:T(1,128)}', space=vmem, size = 0x12000, scoped, tag = 'internal scratch']
  %s0 = inlined_call_operand.hbm [shape: f32[16,32], index: 0, kind: input, shape index: {}]
  %s1 = inlined_call_operand.hbm [shape: bf16[16,16], index: 1, kind: input, shape index: {}]
  %s2 = inlined_call_operand.vmem [shape: bf16[16,8], index: 2, kind: input, shape index: {}]
  %s3 = inlined_call_operand.vmem [shape: bf16[32,32], index: 3, kind: input, shape index: {}]
  %s4 = inlined_call_operand.hbm [shape: bf16[8,32], index: 4, kind: input, shape index: {}]
  %s5 = inlined_call_operand.hbm [shape: f32[1,32], index: 5, kind: input, shape index: {}]
  %s6 = inlined_call_operand.hbm [shape: bf16[32,32], index: 6, kind: input, shape index: {}]
  %s7 = inlined_call_operand.vmem [shape: bf16[8,32], index: 7, kind: input, shape index: {}]
  %s8 = inlined_call_operand.vmem [shape: f32[1,32], index: 8, kind: input, shape index: {}]
  %s9 = inlined_call_operand.hbm [shape: bf16[32,32], index: 9, kind: input, shape index: {}]
  %s10 = inlined_call_operand.vmem [shape: bf16[8,32], index: 10, kind: input, shape index: {}]
  %s11 = inlined_call_operand.vmem [shape: f32[1,32], index: 11, kind: input, shape index: {}]
  %s12 = inlined_call_operand.hbm [shape: f32[16,32], index: 12, kind: output, shape index: {0}]
  %s13 = inlined_call_operand.hbm [shape: bf16[16,32], index: 13, kind: output, shape index: {1}]
  %s14 = inlined_call_operand.hbm [shape: f32[1,1], index: 14, kind: output, shape index: {2}]
  %15 = xla_tuple %s12, %s13, %s14
  %s16 = sld [smem:[#allocation0]]
  $region98: #{tpu_custom_call.1} parent=0
    _
  %s18 = ssub.s32 1, %s16
  %s19 = scalar_select 0, %s18, %s16
  $region1: #{tpu_custom_call.1} parent=0
    #allocation2 [shape = 'u8[8192]{0}', space=vmem, size = 0x2000, scoped, tag = 'input window, operand 0, single buffered']
    #allocation3 [shape = 's32[1]{0}', space=sflag, size = 0x4, scoped, tag = 'scoped memory for tpu_custom_call.1']
    #allocation4 [shape = 's32[1]{0}', space=sflag, size = 0x4, scoped, tag = 'scoped memory for tpu_custom_call.1']
    #allocation5 [shape = 's32[1]{0}', space=sflag, size = 0x4, scoped, tag = 'scoped memory for tpu_custom_call.1']
    #allocation6 [shape = 'u8[4096]{0}', space=vmem, size = 0x1000, scoped, tag = 'input window, operand 1, single buffered']
    #allocation7 [shape = 's32[1]{0}', space=sflag, size = 0x4, scoped, tag = 'scoped memory for tpu_custom_call.1']
    #allocation8 [shape = 'u8[2048]{0}', space=vmem, size = 0x800, scoped, tag = 'input window, operand 4, single buffered']
    #allocation9 [shape = 'u8[512]{0}', space=vmem, size = 0x400, scoped, tag = 'input window, operand 5, single buffered']
    #allocation10 [shape = 's32[1]{0}', space=sflag, size = 0x4, scoped, tag = 'scoped memory for tpu_custom_call.1']
    #allocation11 [shape = 'u8[8192]{0}', space=vmem, size = 0x2000, scoped, tag = 'input window, operand 6, single buffered']
    #allocation12 [shape = 'u8[8192]{0}', space=vmem, size = 0x2000, scoped, tag = 'input window, operand 9, single buffered']
    #allocation13 [shape = 's32[1]{0}', space=sflag, size = 0x4, scoped, tag = 'scoped memory for tpu_custom_call.1']
    #allocation14 [shape = 'u8[8192]{0}', space=vmem, size = 0x2000, scoped, tag = 'output window, operand 0, single buffered']
    #allocation15 [shape = 'u8[4096]{0}', space=vmem, size = 0x1000, scoped, tag = 'output window, operand 1, single buffered']
    #allocation16 [shape = 's32[1]{0}', space=sflag, size = 0x4, scoped, tag = 'scoped memory for tpu_custom_call.1']
    #allocation17 [shape = 'u8[512]{0}', space=smem, size = 0x200, scoped, tag = 'output window, operand 2, single buffered']
    %20 = vsyncpa [#allocation3], 0
    %21 = vsyncpa [#allocation7], 0
    %22 = vsyncpa [#allocation10], 0
    %23 = vsyncpa [#allocation13], 0
    %24 = vsyncpa [#allocation4], 0
    %25 = vsyncpa [#allocation16], 0
    %26 = vsyncpa [#allocation5], 0
    // Predicated region
    $region2: #{tpu_custom_call.1} parent=1 // pred_check
      _
    $region3: #{tpu_custom_call.1} parent=1 // pred_check_branch
      %28 = sbr.rel (0) target = $region5
    $region4: #{tpu_custom_call.1} parent=1 // pred_region
      %s30 = ssub.s32 256, 256
      %31 = vsyncadd [#allocation3], %s30
      %s32 = sshll.u32 [#allocation2], 4
      %s33 = int_to_ptr.vmem [resolvable:$true] %s32
      %38 = dma.hbm_to_vmem [thread:$0]  %s0, 256, %s33, [#allocation3], 128, 128, 8
    $region5: #{tpu_custom_call.1} parent=1 // pred_fallthru
      _
    // Predicated region
    $region6: #{tpu_custom_call.1} parent=1 // pred_check
      _
    $region7: #{tpu_custom_call.1} parent=1 // pred_check_branch
      %40 = sbr.rel (0) target = $region9
    $region8: #{tpu_custom_call.1} parent=1 // pred_region
      %s42 = ssub.s32 128, 128
      %43 = vsyncadd [#allocation7], %s42
      %s44 = sshll.u32 [#allocation6], 4
      %s45 = int_to_ptr.vmem [resolvable:$true] %s44
      %50 = dma.hbm_to_vmem [thread:$0]  %s1, 128, %s45, [#allocation7], 64, 64, 4
    $region9: #{tpu_custom_call.1} parent=1 // pred_fallthru
      _
    // Predicated region
    $region10: #{tpu_custom_call.1} parent=1 // pred_check
      _
    $region11: #{tpu_custom_call.1} parent=1 // pred_check_branch
      %52 = sbr.rel (0) target = $region13
    $region12: #{tpu_custom_call.1} parent=1 // pred_region
      _
    $region13: #{tpu_custom_call.1} parent=1 // pred_fallthru
      _
    // Predicated region
    $region14: #{tpu_custom_call.1} parent=1 // pred_check
      _
    $region15: #{tpu_custom_call.1} parent=1 // pred_check_branch
      %54 = sbr.rel (0) target = $region17
    $region16: #{tpu_custom_call.1} parent=1 // pred_region
      _
    $region17: #{tpu_custom_call.1} parent=1 // pred_fallthru
      _
    // Predicated region
    $region18: #{tpu_custom_call.1} parent=1 // pred_check
      _
    $region19: #{tpu_custom_call.1} parent=1 // pred_check_branch
      %56 = sbr.rel (0) target = $region21
    $region20: #{tpu_custom_call.1} parent=1 // pred_region
      %s58 = ssub.s32 64, 64
      %59 = vsyncadd [#allocation7], %s58
      %s61 = sshll.u32 [#allocation8], 4
      %s62 = int_to_ptr.vmem [resolvable:$true] %s61
      %64 = dma.hbm_to_vmem [thread:$0]  %s4, 64, %s62, [#allocation7]
    $region21: #{tpu_custom_call.1} parent=1 // pred_fallthru
      _
    // Predicated region
    $region22: #{tpu_custom_call.1} parent=1 // pred_check
      _
    $region23: #{tpu_custom_call.1} parent=1 // pred_check_branch
      %66 = sbr.rel (0) target = $region25
    $region24: #{tpu_custom_call.1} parent=1 // pred_region
      %s68 = ssub.s32 16, 16
      %69 = vsyncadd [#allocation10], %s68
      %s71 = sshll.u32 [#allocation9], 4
      %s72 = int_to_ptr.vmem [resolvable:$true] %s71
      %74 = dma.hbm_to_vmem [thread:$0]  %s5, 16, %s72, [#allocation10]
    $region25: #{tpu_custom_call.1} parent=1 // pred_fallthru
      _
    // Predicated region
    $region26: #{tpu_custom_call.1} parent=1 // pred_check
      _
    $region27: #{tpu_custom_call.1} parent=1 // pred_check_branch
      %76 = sbr.rel (0) target = $region29
    $region28: #{tpu_custom_call.1} parent=1 // pred_region
      %s78 = ssub.s32 256, 256
      %79 = vsyncadd [#allocation10], %s78
      %s80 = sshll.u32 [#allocation11], 4
      %s81 = int_to_ptr.vmem [resolvable:$true] %s80
      %86 = dma.hbm_to_vmem [thread:$0]  %s6, 256, %s81, [#allocation10], 64, 64, 4
    $region29: #{tpu_custom_call.1} parent=1 // pred_fallthru
      _
    // Predicated region
    $region30: #{tpu_custom_call.1} parent=1 // pred_check
      _
    $region31: #{tpu_custom_call.1} parent=1 // pred_check_branch
      %88 = sbr.rel (0) target = $region33
    $region32: #{tpu_custom_call.1} parent=1 // pred_region
      _
    $region33: #{tpu_custom_call.1} parent=1 // pred_fallthru
      _
    // Predicated region
    $region34: #{tpu_custom_call.1} parent=1 // pred_check
      _
    $region35: #{tpu_custom_call.1} parent=1 // pred_check_branch
      %90 = sbr.rel (0) target = $region37
    $region36: #{tpu_custom_call.1} parent=1 // pred_region
      _
    $region37: #{tpu_custom_call.1} parent=1 // pred_fallthru
      _
    // Predicated region
    $region38: #{tpu_custom_call.1} parent=1 // pred_check
      _
    $region39: #{tpu_custom_call.1} parent=1 // pred_check_branch
      %92 = sbr.rel (0) target = $region41
    $region40: #{tpu_custom_call.1} parent=1 // pred_region
      %s94 = ssub.s32 256, 256
      %95 = vsyncadd [#allocation13], %s94
      %s96 = sshll.u32 [#allocation12], 4
      %s97 = int_to_ptr.vmem [resolvable:$true] %s96
      %102 = dma.hbm_to_vmem [thread:$0]  %s9, 256, %s97, [#allocation13], 64, 64, 4
    $region41: #{tpu_custom_call.1} parent=1 // pred_fallthru
      _
    // Predicated region
    $region42: #{tpu_custom_call.1} parent=1 // pred_check
      _
    $region43: #{tpu_custom_call.1} parent=1 // pred_check_branch
      %104 = sbr.rel (0) target = $region45
    $region44: #{tpu_custom_call.1} parent=1 // pred_region
      _
    $region45: #{tpu_custom_call.1} parent=1 // pred_fallthru
      _
    // Predicated region
    $region46: #{tpu_custom_call.1} parent=1 // pred_check
      _
    $region47: #{tpu_custom_call.1} parent=1 // pred_check_branch
      %106 = sbr.rel (0) target = $region49
    $region48: #{tpu_custom_call.1} parent=1 // pred_region
      _
    $region49: #{tpu_custom_call.1} parent=1 // pred_fallthru
      _
    // Predicated region
    $region50: #{tpu_custom_call.1} parent=1 // pred_check
      _
    $region51: #{tpu_custom_call.1} parent=1 // pred_check_branch
      %108 = sbr.rel (0) target = $region53
    $region52: #{tpu_custom_call.1} parent=1 // pred_region
      %109 = dma.done [#allocation3], 256
    $region53: #{tpu_custom_call.1} parent=1 // pred_fallthru
      _
    // Predicated region
    $region54: #{tpu_custom_call.1} parent=1 // pred_check
      _
    $region55: #{tpu_custom_call.1} parent=1 // pred_check_branch
      %111 = sbr.rel (0) target = $region57
    $region56: #{tpu_custom_call.1} parent=1 // pred_region
      %112 = dma.done [#allocation7], 128
    $region57: #{tpu_custom_call.1} parent=1 // pred_fallthru
      _
    // Predicated region
    $region58: #{tpu_custom_call.1} parent=1 // pred_check
      _
    $region59: #{tpu_custom_call.1} parent=1 // pred_check_branch
      %114 = sbr.rel (0) target = $region61
    $region60: #{tpu_custom_call.1} parent=1 // pred_region
      %115 = dma.done [#allocation7], 64
    $region61: #{tpu_custom_call.1} parent=1 // pred_fallthru
      _
    // Predicated region
    $region62: #{tpu_custom_call.1} parent=1 // pred_check
      _
    $region63: #{tpu_custom_call.1} parent=1 // pred_check_branch
      %117 = sbr.rel (0) target = $region65
    $region64: #{tpu_custom_call.1} parent=1 // pred_region
      %118 = dma.done [#allocation10], 16
    $region65: #{tpu_custom_call.1} parent=1 // pred_fallthru
      _
    // Predicated region
    $region66: #{tpu_custom_call.1} parent=1 // pred_check
      _
    $region67: #{tpu_custom_call.1} parent=1 // pred_check_branch
      %120 = sbr.rel (0) target = $region69
    $region68: #{tpu_custom_call.1} parent=1 // pred_region
      %121 = dma.done [#allocation10], 256
    $region69: #{tpu_custom_call.1} parent=1 // pred_fallthru
      _
    // Predicated region
    $region70: #{tpu_custom_call.1} parent=1 // pred_check
      _
    $region71: #{tpu_custom_call.1} parent=1 // pred_check_branch
      %123 = sbr.rel (0) target = $region73
    $region72: #{tpu_custom_call.1} parent=1 // pred_region
      %124 = dma.done [#allocation13], 256
    $region73: #{tpu_custom_call.1} parent=1 // pred_fallthru
      _
    %v126 = vld [vmem:[#allocation2] sm:$0xff]
    %v127 = vld [vmem:[#allocation2 + $0x8] sm:$0xff]
    %v128 = vld [vmem:[#allocation6] sm:$0xf]
    %v129 = vld [vmem:[#allocation6 + $0x4] sm:$0xf]
    %v130 = vld [vmem:[%s2] sm:$0xf]
    %v131 = vld [vmem:[%s2 + $0x4] sm:$0xf]
    %v132 = vpack.c.bf16 %v127, %v126
    %v135 = vunpack.c.l.b16 %v128
    %v136 = vunpack.c.l.b16 %v129
    %v137 = vpack.c.b16 %v136, %v135
    %vm138 = vcmask 130048
    %v140 = vsel %vm138, %v137, 0
    %142 = vmatprep.subr.bf16.mxu0 0
    %143 = vmatpush1.bf16.msra.mxu0 0
    %144 = vmatprep.subr.bf16.mxu0 0
    %145 = vmatpush1.bf16.msra.mxu0 0
    %146 = vmatprep.subr.bf16.mxu0 0
    %147 = vmatpush1.bf16.msra.mxu0 0
    %148 = vmatprep.subr.bf16.mxu0 0
    %149 = vmatpush1.bf16.msra.mxu0 0
    %150 = vmatprep.subr.bf16.mxu0 0
    %151 = vmatpush1.bf16.msra.mxu0 0
    %152 = vmatprep.subr.bf16.mxu0 0
    %153 = vmatpush1.bf16.msra.mxu0 0
    %154 = vmatprep.subr.bf16.mxu0 0
    %155 = vmatpush1.bf16.msra.mxu0 0
    %156 = vmatprep.subr.bf16.mxu0 0
    %157 = vmatpush1.bf16.msra.mxu0 %v132
    %158 = vmatprep.subr.bf16.mxu0 0
    %159 = vmatpush2.bf16.msra.mxu0 0
    %160 = vmatprep.subr.bf16.mxu0 0
    %161 = vmatpush2.bf16.msra.mxu0 0
    %162 = vmatprep.subr.bf16.mxu0 0
    %163 = vmatpush2.bf16.msra.mxu0 0
    %164 = vmatprep.subr.bf16.mxu0 0
    %165 = vmatpush2.bf16.msra.mxu0 0
    %166 = vmatprep.subr.bf16.mxu0 0
    %167 = vmatpush2.bf16.msra.mxu0 0
    %168 = vmatprep.subr.bf16.mxu0 0
    %169 = vmatpush2.bf16.msra.mxu0 0
    %170 = vmatprep.subr.bf16.mxu0 0
    %171 = vmatpush2.bf16.msra.mxu0 0
    %172 = vmatprep.subr.bf16.mxu0 0
    %173 = vmatpush2.bf16.msra.mxu0 0
    %174 = vmatprep.mubr.bf16.mxu0 0
    %175 = vmatmul.mubr.bf16.gmra.mxu0 %v140
    %v176 = vpop.f32.mrf.mxu0
    %v177 = vadd.f32 0.0, %v176
    %v178 = vpop.f32.mrf.mxu0
    %v179 = vpop.f32.mrf.mxu0
    %v180 = vadd.f32 0.0, %v179
    %v181 = vpop.f32.mrf.mxu0
    %182 = vdwg.mxu0
    %v183 = vpack.c.bf16 %v180, %v177
    %v184 = vld [vmem:[%s3] sm:$0xf]
    %v185 = vld [vmem:[%s3 + $0x4] sm:$0xf]
    %v186 = vld [vmem:[%s3 + $0x8] sm:$0xf]
    %v187 = vld [vmem:[%s3 + $0xc] sm:$0xf]
    %v192 = vunpack.c.l.b16 %v184
    %v193 = vunpack.c.l.b16 %v185
    %v194 = vunpack.c.l.b16 %v186
    %v195 = vunpack.c.l.b16 %v187
    %v196 = vpack.c.b16 %v193, %v192
    %v197 = vpack.c.b16 %v195, %v194
    %vm200 = vcmask 261120
    %v202 = vsel %vm200, %v183, 0
    %204 = vmatprep.subr.bf16.mxu0 0
    %205 = vmatpush1.bf16.msra.mxu0 0
    %206 = vmatprep.subr.bf16.mxu0 0
    %207 = vmatpush1.bf16.msra.mxu0 0
    %208 = vmatprep.subr.bf16.mxu0 0
    %209 = vmatpush1.bf16.msra.mxu0 0
    %210 = vmatprep.subr.bf16.mxu0 0
    %211 = vmatpush1.bf16.msra.mxu0 0
    %212 = vmatprep.subr.bf16.mxu0 0
    %213 = vmatpush1.bf16.msra.mxu0 0
    %214 = vmatprep.subr.bf16.mxu0 0
    %215 = vmatpush1.bf16.msra.mxu0 0
    %216 = vmatprep.subr.bf16.mxu0 0
    %217 = vmatpush1.bf16.msra.mxu0 %v197
    %218 = vmatprep.subr.bf16.mxu0 0
    %219 = vmatpush1.bf16.msra.mxu0 %v196
    %220 = vmatprep.subr.bf16.mxu0 0
    %221 = vmatpush2.bf16.msra.mxu0 0
    %222 = vmatprep.subr.bf16.mxu0 0
    %223 = vmatpush2.bf16.msra.mxu0 0
    %224 = vmatprep.subr.bf16.mxu0 0
    %225 = vmatpush2.bf16.msra.mxu0 0
    %226 = vmatprep.subr.bf16.mxu0 0
    %227 = vmatpush2.bf16.msra.mxu0 0
    %228 = vmatprep.subr.bf16.mxu0 0
    %229 = vmatpush2.bf16.msra.mxu0 0
    %230 = vmatprep.subr.bf16.mxu0 0
    %231 = vmatpush2.bf16.msra.mxu0 0
    %232 = vmatprep.subr.bf16.mxu0 0
    %233 = vmatpush2.bf16.msra.mxu0 0
    %234 = vmatprep.subr.bf16.mxu0 0
    %235 = vmatpush2.bf16.msra.mxu0 0
    %236 = vmatprep.mubr.bf16.mxu0 0
    %237 = vmatmul.mubr.bf16.gmra.mxu0 %v202
    %v238 = vpop.f32.mrf.mxu0
    %v239 = vadd.f32 0.0, %v238
    %v240 = vpop.f32.mrf.mxu0
    %v241 = vpop.f32.mrf.mxu0
    %v242 = vadd.f32 0.0, %v241
    %v243 = vpop.f32.mrf.mxu0
    %244 = vdwg.mxu0
    %v245 = vld [vmem:[#allocation8] sm:$0xf]
    %v248 = vunpack.c.l.b16 %v130
    %v249 = vunpack.c.l.b16 %v131
    %v250 = vpack.c.b16 %v249, %v248
    %vm251 = vcmask 64512
    %v253 = vsel %vm251, %v250, 0
    %vm255 = vcmask 1043456
    %v257 = vsel %vm255, %v245, 0
    %259 = vmatprep.subr.bf16.mxu0 0
    %260 = vmatpush1.bf16.msra.mxu0 0
    %261 = vmatprep.subr.bf16.mxu0 0
    %262 = vmatpush1.bf16.msra.mxu0 0
    %263 = vmatprep.subr.bf16.mxu0 0
    %264 = vmatpush1.bf16.msra.mxu0 0
    %265 = vmatprep.subr.bf16.mxu0 0
    %266 = vmatpush1.bf16.msra.mxu0 0
    %267 = vmatprep.subr.bf16.mxu0 0
    %268 = vmatpush1.bf16.msra.mxu0 0
    %269 = vmatprep.subr.bf16.mxu0 0
    %270 = vmatpush1.bf16.msra.mxu0 0
    %271 = vmatprep.subr.bf16.mxu0 0
    %272 = vmatpush1.bf16.msra.mxu0 0
    %273 = vmatprep.subr.bf16.mxu0 0
    %274 = vmatpush1.bf16.msra.mxu0 %v257
    %275 = vmatprep.subr.bf16.mxu0 0
    %276 = vmatpush2.bf16.msra.mxu0 0
    %277 = vmatprep.subr.bf16.mxu0 0
    %278 = vmatpush2.bf16.msra.mxu0 0
    %279 = vmatprep.subr.bf16.mxu0 0
    %280 = vmatpush2.bf16.msra.mxu0 0
    %281 = vmatprep.subr.bf16.mxu0 0
    %282 = vmatpush2.bf16.msra.mxu0 0
    %283 = vmatprep.subr.bf16.mxu0 0
    %284 = vmatpush2.bf16.msra.mxu0 0
    %285 = vmatprep.subr.bf16.mxu0 0
    %286 = vmatpush2.bf16.msra.mxu0 0
    %287 = vmatprep.subr.bf16.mxu0 0
    %288 = vmatpush2.bf16.msra.mxu0 0
    %289 = vmatprep.subr.bf16.mxu0 0
    %290 = vmatpush2.bf16.msra.mxu0 0
    %291 = vmatprep.mubr.bf16.mxu0 0
    %292 = vmatmul.mubr.bf16.gmra.mxu0 %v253
    %v293 = vpop.f32.mrf.mxu0
    %v294 = vadd.f32 0.0, %v293
    %v295 = vpop.f32.mrf.mxu0
    %v296 = vpop.f32.mrf.mxu0
    %v297 = vadd.f32 0.0, %v296
    %v298 = vpop.f32.mrf.mxu0
    %299 = vdwg.mxu0
    %v300 = vadd.f32 %v126, %v239
    %v301 = vadd.f32 %v127, %v242
    %v302 = vadd.f32 %v300, %v294
    %v303 = vadd.f32 %v301, %v297
    %v304 = vld [vmem:[#allocation9] sm:$0x1]
    %v306 = vlaneseq
    %v307 = vshrl.u32 %v306, 7
    %v308 = vsub.s32 0, %v307
    %v309 = vrot.slane %v304, %v308
    %v311 = vadd.f32 %v302, %v309
    %v312 = vadd.f32 %v303, %v309
    %v313 = vpack.c.bf16 %v312, %v311
    %314 = vmatprep.subr.bf16.mxu0 0
    %315 = vmatpush1.bf16.msra.mxu0 0
    %316 = vmatprep.subr.bf16.mxu0 0
    %317 = vmatpush1.bf16.msra.mxu0 0
    %318 = vmatprep.subr.bf16.mxu0 0
    %319 = vmatpush1.bf16.msra.mxu0 0
    %320 = vmatprep.subr.bf16.mxu0 0
    %321 = vmatpush1.bf16.msra.mxu0 0
    %322 = vmatprep.subr.bf16.mxu0 0
    %323 = vmatpush1.bf16.msra.mxu0 0
    %324 = vmatprep.subr.bf16.mxu0 0
    %325 = vmatpush1.bf16.msra.mxu0 0
    %326 = vmatprep.subr.bf16.mxu0 0
    %327 = vmatpush1.bf16.msra.mxu0 0
    %328 = vmatprep.subr.bf16.mxu0 0
    %329 = vmatpush1.bf16.msra.mxu0 %v313
    %330 = vmatprep.subr.bf16.mxu0 0
    %331 = vmatpush2.bf16.msra.mxu0 0
    %332 = vmatprep.subr.bf16.mxu0 0
    %333 = vmatpush2.bf16.msra.mxu0 0
    %334 = vmatprep.subr.bf16.mxu0 0
    %335 = vmatpush2.bf16.msra.mxu0 0
    %336 = vmatprep.subr.bf16.mxu0 0
    %337 = vmatpush2.bf16.msra.mxu0 0
    %338 = vmatprep.subr.bf16.mxu0 0
    %339 = vmatpush2.bf16.msra.mxu0 0
    %340 = vmatprep.subr.bf16.mxu0 0
    %341 = vmatpush2.bf16.msra.mxu0 0
    %342 = vmatprep.subr.bf16.mxu0 0
    %343 = vmatpush2.bf16.msra.mxu0 0
    %344 = vmatprep.subr.bf16.mxu0 0
    %345 = vmatpush2.bf16.msra.mxu0 0
    %346 = vmatprep.mubr.bf16.mxu0 0
    %347 = vmatmul.mubr.bf16.gmra.mxu0 %v140
    %v348 = vpop.f32.mrf.mxu0
    %v349 = vadd.f32 0.0, %v348
    %v350 = vpop.f32.mrf.mxu0
    %v351 = vpop.f32.mrf.mxu0
    %v352 = vadd.f32 0.0, %v351
    %v353 = vpop.f32.mrf.mxu0
    %354 = vdwg.mxu0
    %v355 = vpack.c.bf16 %v352, %v349
    %v356 = vld [vmem:[#allocation11] sm:$0xf]
    %v357 = vld [vmem:[#allocation11 + $0x4] sm:$0xf]
    %v358 = vld [vmem:[#allocation11 + $0x8] sm:$0xf]
    %v359 = vld [vmem:[#allocation11 + $0xc] sm:$0xf]
    %v364 = vunpack.c.l.b16 %v356
    %v365 = vunpack.c.l.b16 %v357
    %v366 = vunpack.c.l.b16 %v358
    %v367 = vunpack.c.l.b16 %v359
    %v368 = vpack.c.b16 %v365, %v364
    %v369 = vpack.c.b16 %v367, %v366
    %v373 = vsel %vm200, %v355, 0
    %375 = vmatprep.subr.bf16.mxu0 0
    %376 = vmatpush1.bf16.msra.mxu0 0
    %377 = vmatprep.subr.bf16.mxu0 0
    %378 = vmatpush1.bf16.msra.mxu0 0
    %379 = vmatprep.subr.bf16.mxu0 0
    %380 = vmatpush1.bf16.msra.mxu0 0
    %381 = vmatprep.subr.bf16.mxu0 0
    %382 = vmatpush1.bf16.msra.mxu0 0
    %383 = vmatprep.subr.bf16.mxu0 0
    %384 = vmatpush1.bf16.msra.mxu0 0
    %385 = vmatprep.subr.bf16.mxu0 0
    %386 = vmatpush1.bf16.msra.mxu0 0
    %387 = vmatprep.subr.bf16.mxu0 0
    %388 = vmatpush1.bf16.msra.mxu0 %v369
    %389 = vmatprep.subr.bf16.mxu0 0
    %390 = vmatpush1.bf16.msra.mxu0 %v368
    %391 = vmatprep.subr.bf16.mxu0 0
    %392 = vmatpush2.bf16.msra.mxu0 0
    %393 = vmatprep.subr.bf16.mxu0 0
    %394 = vmatpush2.bf16.msra.mxu0 0
    %395 = vmatprep.subr.bf16.mxu0 0
    %396 = vmatpush2.bf16.msra.mxu0 0
    %397 = vmatprep.subr.bf16.mxu0 0
    %398 = vmatpush2.bf16.msra.mxu0 0
    %399 = vmatprep.subr.bf16.mxu0 0
    %400 = vmatpush2.bf16.msra.mxu0 0
    %401 = vmatprep.subr.bf16.mxu0 0
    %402 = vmatpush2.bf16.msra.mxu0 0
    %403 = vmatprep.subr.bf16.mxu0 0
    %404 = vmatpush2.bf16.msra.mxu0 0
    %405 = vmatprep.subr.bf16.mxu0 0
    %406 = vmatpush2.bf16.msra.mxu0 0
    %407 = vmatprep.mubr.bf16.mxu0 0
    %408 = vmatmul.mubr.bf16.gmra.mxu0 %v373
    %v409 = vpop.f32.mrf.mxu0
    %v410 = vadd.f32 0.0, %v409
    %v411 = vpop.f32.mrf.mxu0
    %v412 = vpop.f32.mrf.mxu0
    %v413 = vadd.f32 0.0, %v412
    %v414 = vpop.f32.mrf.mxu0
    %415 = vdwg.mxu0
    %v416 = vld [vmem:[%s7] sm:$0xf]
    %v418 = vsel %vm255, %v416, 0
    %420 = vmatprep.subr.bf16.mxu0 0
    %421 = vmatpush1.bf16.msra.mxu0 0
    %422 = vmatprep.subr.bf16.mxu0 0
    %423 = vmatpush1.bf16.msra.mxu0 0
    %424 = vmatprep.subr.bf16.mxu0 0
    %425 = vmatpush1.bf16.msra.mxu0 0
    %426 = vmatprep.subr.bf16.mxu0 0
    %427 = vmatpush1.bf16.msra.mxu0 0
    %428 = vmatprep.subr.bf16.mxu0 0
    %429 = vmatpush1.bf16.msra.mxu0 0
    %430 = vmatprep.subr.bf16.mxu0 0
    %431 = vmatpush1.bf16.msra.mxu0 0
    %432 = vmatprep.subr.bf16.mxu0 0
    %433 = vmatpush1.bf16.msra.mxu0 0
    %434 = vmatprep.subr.bf16.mxu0 0
    %435 = vmatpush1.bf16.msra.mxu0 %v418
    %436 = vmatprep.subr.bf16.mxu0 0
    %437 = vmatpush2.bf16.msra.mxu0 0
    %438 = vmatprep.subr.bf16.mxu0 0
    %439 = vmatpush2.bf16.msra.mxu0 0
    %440 = vmatprep.subr.bf16.mxu0 0
    %441 = vmatpush2.bf16.msra.mxu0 0
    %442 = vmatprep.subr.bf16.mxu0 0
    %443 = vmatpush2.bf16.msra.mxu0 0
    %444 = vmatprep.subr.bf16.mxu0 0
    %445 = vmatpush2.bf16.msra.mxu0 0
    %446 = vmatprep.subr.bf16.mxu0 0
    %447 = vmatpush2.bf16.msra.mxu0 0
    %448 = vmatprep.subr.bf16.mxu0 0
    %449 = vmatpush2.bf16.msra.mxu0 0
    %450 = vmatprep.subr.bf16.mxu0 0
    %451 = vmatpush2.bf16.msra.mxu0 0
    %452 = vmatprep.mubr.bf16.mxu0 0
    %453 = vmatmul.mubr.bf16.gmra.mxu0 %v253
    %v454 = vpop.f32.mrf.mxu0
    %v455 = vadd.f32 0.0, %v454
    %v456 = vpop.f32.mrf.mxu0
    %v457 = vpop.f32.mrf.mxu0
    %v458 = vadd.f32 0.0, %v457
    %v459 = vpop.f32.mrf.mxu0
    %460 = vdwg.mxu0
    %v461 = vadd.f32 %v311, %v410
    %v462 = vadd.f32 %v312, %v413
    %v463 = vadd.f32 %v461, %v455
    %v464 = vadd.f32 %v462, %v458
    %v465 = vld [vmem:[%s8] sm:$0x1]
    %v467 = vlaneseq
    %v468 = vshrl.u32 %v467, 7
    %v469 = vsub.s32 0, %v468
    %v470 = vrot.slane %v465, %v469
    %v472 = vadd.f32 %v463, %v470
    %v473 = vadd.f32 %v464, %v470
    %v474 = vld [vmem:[#allocation12] sm:$0xf]
    %v475 = vld [vmem:[#allocation12 + $0x4] sm:$0xf]
    %v476 = vld [vmem:[#allocation12 + $0x8] sm:$0xf]
    %v477 = vld [vmem:[#allocation12 + $0xc] sm:$0xf]
    %v482 = vunpack.c.l.b16 %v474
    %v483 = vunpack.c.l.b16 %v475
    %v484 = vunpack.c.l.b16 %v476
    %v485 = vunpack.c.l.b16 %v477
    %v486 = vpack.c.b16 %v483, %v482
    %v487 = vpack.c.b16 %v485, %v484
    %490 = vmatprep.subr.bf16.mxu0 0
    %491 = vmatpush1.bf16.msra.mxu0 0
    %492 = vmatprep.subr.bf16.mxu0 0
    %493 = vmatpush1.bf16.msra.mxu0 0
    %494 = vmatprep.subr.bf16.mxu0 0
    %495 = vmatpush1.bf16.msra.mxu0 0
    %496 = vmatprep.subr.bf16.mxu0 0
    %497 = vmatpush1.bf16.msra.mxu0 0
    %498 = vmatprep.subr.bf16.mxu0 0
    %499 = vmatpush1.bf16.msra.mxu0 0
    %500 = vmatprep.subr.bf16.mxu0 0
    %501 = vmatpush1.bf16.msra.mxu0 0
    %502 = vmatprep.subr.bf16.mxu0 0
    %503 = vmatpush1.bf16.msra.mxu0 %v487
    %504 = vmatprep.subr.bf16.mxu0 0
    %505 = vmatpush1.bf16.msra.mxu0 %v486
    %506 = vmatprep.subr.bf16.mxu0 0
    %507 = vmatpush2.bf16.msra.mxu0 0
    %508 = vmatprep.subr.bf16.mxu0 0
    %509 = vmatpush2.bf16.msra.mxu0 0
    %510 = vmatprep.subr.bf16.mxu0 0
    %511 = vmatpush2.bf16.msra.mxu0 0
    %512 = vmatprep.subr.bf16.mxu0 0
    %513 = vmatpush2.bf16.msra.mxu0 0
    %514 = vmatprep.subr.bf16.mxu0 0
    %515 = vmatpush2.bf16.msra.mxu0 0
    %516 = vmatprep.subr.bf16.mxu0 0
    %517 = vmatpush2.bf16.msra.mxu0 0
    %518 = vmatprep.subr.bf16.mxu0 0
    %519 = vmatpush2.bf16.msra.mxu0 0
    %520 = vmatprep.subr.bf16.mxu0 0
    %521 = vmatpush2.bf16.msra.mxu0 0
    %522 = vmatprep.mubr.bf16.mxu0 0
    %523 = vmatmul.mubr.bf16.gmra.mxu0 %v373
    %v524 = vpop.f32.mrf.mxu0
    %v525 = vadd.f32 0.0, %v524
    %v526 = vpop.f32.mrf.mxu0
    %v527 = vpop.f32.mrf.mxu0
    %v528 = vadd.f32 0.0, %v527
    %v529 = vpop.f32.mrf.mxu0
    %530 = vdwg.mxu0
    %v531 = vld [vmem:[%s10] sm:$0xf]
    %v533 = vsel %vm255, %v531, 0
    %535 = vmatprep.subr.bf16.mxu0 0
    %536 = vmatpush1.bf16.msra.mxu0 0
    %537 = vmatprep.subr.bf16.mxu0 0
    %538 = vmatpush1.bf16.msra.mxu0 0
    %539 = vmatprep.subr.bf16.mxu0 0
    %540 = vmatpush1.bf16.msra.mxu0 0
    %541 = vmatprep.subr.bf16.mxu0 0
    %542 = vmatpush1.bf16.msra.mxu0 0
    %543 = vmatprep.subr.bf16.mxu0 0
    %544 = vmatpush1.bf16.msra.mxu0 0
    %545 = vmatprep.subr.bf16.mxu0 0
    %546 = vmatpush1.bf16.msra.mxu0 0
    %547 = vmatprep.subr.bf16.mxu0 0
    %548 = vmatpush1.bf16.msra.mxu0 0
    %549 = vmatprep.subr.bf16.mxu0 0
    %550 = vmatpush1.bf16.msra.mxu0 %v533
    %551 = vmatprep.subr.bf16.mxu0 0
    %552 = vmatpush2.bf16.msra.mxu0 0
    %553 = vmatprep.subr.bf16.mxu0 0
    %554 = vmatpush2.bf16.msra.mxu0 0
    %555 = vmatprep.subr.bf16.mxu0 0
    %556 = vmatpush2.bf16.msra.mxu0 0
    %557 = vmatprep.subr.bf16.mxu0 0
    %558 = vmatpush2.bf16.msra.mxu0 0
    %559 = vmatprep.subr.bf16.mxu0 0
    %560 = vmatpush2.bf16.msra.mxu0 0
    %561 = vmatprep.subr.bf16.mxu0 0
    %562 = vmatpush2.bf16.msra.mxu0 0
    %563 = vmatprep.subr.bf16.mxu0 0
    %564 = vmatpush2.bf16.msra.mxu0 0
    %565 = vmatprep.subr.bf16.mxu0 0
    %566 = vmatpush2.bf16.msra.mxu0 0
    %567 = vmatprep.mubr.bf16.mxu0 0
    %568 = vmatmul.mubr.bf16.gmra.mxu0 %v253
    %v569 = vpop.f32.mrf.mxu0
    %v570 = vadd.f32 0.0, %v569
    %v571 = vpop.f32.mrf.mxu0
    %v572 = vpop.f32.mrf.mxu0
    %v573 = vadd.f32 0.0, %v572
    %v574 = vpop.f32.mrf.mxu0
    %575 = vdwg.mxu0
    %v576 = vadd.f32 %v311, %v525
    %v577 = vadd.f32 %v312, %v528
    %v578 = vadd.f32 %v576, %v570
    %v579 = vadd.f32 %v577, %v573
    %v580 = vld [vmem:[%s11] sm:$0x1]
    %v582 = vlaneseq
    %v583 = vshrl.u32 %v582, 7
    %v584 = vsub.s32 0, %v583
    %v585 = vrot.slane %v580, %v584
    %v587 = vadd.f32 %v578, %v585
    %v588 = vadd.f32 %v579, %v585
    %589 = vst.msk [vmem:[#allocation14] sm:$0xff] %vm200, %v311
    %590 = vst.msk [vmem:[#allocation14 + $0x8] sm:$0xff] %vm200, %v312
    %v591 = vpack.c.bf16 %v473, %v472
    %v593 = vunpack.c.l.b16 %v591
    %v594 = vunpack.c.h.b16 %v591
    %v595 = vpack.c.b16 %v593, %v593
    %v596 = vpack.c.b16 %v594, %v594
    %vm599 = vcmask 257024
    %600 = vst.msk [vmem:[#allocation15] sm:$0xf] %vm599, %v595
    %601 = vst.msk [vmem:[#allocation15 + $0x4] sm:$0xf] %vm599, %v596
    %v602 = vtanh.pop %v472
    %v603 = vtanh.pop %v473
    %v604 = vtanh.pop %v587
    %v605 = vtanh.pop %v588
    %v606 = vmul.f32 %v604, 2.0
    %v607 = vmul.f32 %v605, 2.0
    %v608 = vadd.f32 %v606, 1.0
    %v609 = vadd.f32 %v607, 1.0
    %v610 = vmul.f32 %v602, %v602
    %v611 = vmul.f32 %v603, %v603
    %v612 = vsub.f32 %v608, %v610
    %v613 = vsub.f32 %v609, %v611
    %v614 = vmul.f32 %v606, 1.442695
    %v615 = vpow.pop %v614
    %v616 = vmul.f32 %v607, 1.442695
    %v617 = vpow.pop %v616
    %v618 = vsub.f32 %v612, %v615
    %v619 = vsub.f32 %v613, %v617
    %v620 = vsel %vm200, %v618, 0.0
    %v621 = vsel %vm200, %v619, 0.0
    %v622 = vadd.f32 %v620, %v621
    %623 = vadd.xlane.f32.xlu0 %v622
    %v624 = vpop.xlane.xlu0 %623
    %v625 = vrot.slane %v624, 4
    %v626 = vadd.f32 %v624, %v625
    %v627 = vrot.slane %v626, 2
    %v628 = vadd.f32 %v626, %v627
    %v629 = vrot.slane %v628, 1
    %v630 = vadd.f32 %v628, %v629
    %s631 = vtos %v630
    %v632 = vrcp.pop 16.0
    %s633 = vtos %v632
    %s634 = smul.f32 %s631, %s633
    %s635 = smul.f32 %s634, -0.03125
    %s636 = scalar_lea.smem [#allocation17], 0
    %637 = sst [smem:[%s636]] %s635
    // Predicated region
    $region74: #{tpu_custom_call.1} parent=1 // pred_check
      _
    $region75: #{tpu_custom_call.1} parent=1 // pred_check_branch
      %639 = sbr.rel (0) target = $region77
    $region76: #{tpu_custom_call.1} parent=1 // pred_region
      %s641 = ssub.s32 256, 256
      %642 = vsyncadd [#allocation4], %s641
      %s643 = sshll.u32 [#allocation14], 4
      %s644 = int_to_ptr.vmem [resolvable:$true] %s643
      %649 = dma.vmem_to_hbm [thread:$0]  %s644, 256, %s12, [#allocation4], 128, 128, 8
    $region77: #{tpu_custom_call.1} parent=1 // pred_fallthru
      _
    // Predicated region
    $region78: #{tpu_custom_call.1} parent=1 // pred_check
      _
    $region79: #{tpu_custom_call.1} parent=1 // pred_check_branch
      %651 = sbr.rel (0) target = $region81
    $region80: #{tpu_custom_call.1} parent=1 // pred_region
      %s653 = ssub.s32 128, 128
      %654 = vsyncadd [#allocation16], %s653
      %s655 = sshll.u32 [#allocation15], 4
      %s656 = int_to_ptr.vmem [resolvable:$true] %s655
      %661 = dma.vmem_to_hbm [thread:$0]  %s656, 128, %s13, [#allocation16], 64, 64, 4
    $region81: #{tpu_custom_call.1} parent=1 // pred_fallthru
      _
    // Predicated region
    $region82: #{tpu_custom_call.1} parent=1 // pred_check
      _
    $region83: #{tpu_custom_call.1} parent=1 // pred_check_branch
      %663 = sbr.rel (0) target = $region85
    $region84: #{tpu_custom_call.1} parent=1 // pred_region
      %s665 = ssub.s32 16, 16
      %666 = vsyncadd [#allocation5], %s665
      %669 = dma.smem_to_hbm [#allocation17], 16, %s14, [#allocation5]
    $region85: #{tpu_custom_call.1} parent=1 // pred_fallthru
      _
    // Predicated region
    $region86: #{tpu_custom_call.1} parent=1 // pred_check
      _
    $region87: #{tpu_custom_call.1} parent=1 // pred_check_branch
      %671 = sbr.rel (0) target = $region89
    $region88: #{tpu_custom_call.1} parent=1 // pred_region
      %672 = dma.done [#allocation4], 256
    $region89: #{tpu_custom_call.1} parent=1 // pred_fallthru
      _
    // Predicated region
    $region90: #{tpu_custom_call.1} parent=1 // pred_check
      _
    $region91: #{tpu_custom_call.1} parent=1 // pred_check_branch
      %674 = sbr.rel (0) target = $region93
    $region92: #{tpu_custom_call.1} parent=1 // pred_region
      %675 = dma.done [#allocation16], 128
    $region93: #{tpu_custom_call.1} parent=1 // pred_fallthru
      _
    // Predicated region
    $region94: #{tpu_custom_call.1} parent=1 // pred_check
      _
    $region95: #{tpu_custom_call.1} parent=1 // pred_check_branch
      %677 = sbr.rel (0) target = $region97
    $region96: #{tpu_custom_call.1} parent=1 // pred_region
      %678 = dma.done [#allocation5], 16
    $region97: #{tpu_custom_call.1} parent=1 // pred_fallthru
      _
    %679 = sfence
    %680 = vsyncpa [#allocation3], 1
    %681 = vsyncpa [#allocation7], 1
    %682 = vsyncpa [#allocation10], 1
    %683 = vsyncpa [#allocation13], 1
    %684 = vsyncpa [#allocation4], 1
    %685 = vsyncpa [#allocation16], 1
    %686 = vsyncpa [#allocation5], 1

</llo_original>
